<compile_context>
chip_gen: v5e
topology: v5e:2x2
jax: 0.10.0
libtpu: 0.0.40
codegen_flags: <defaults>
</compile_context>

<pallas_src>
import functools

import jax
import jax.numpy as jnp
from jax.experimental import pallas as pl
from jax.experimental.pallas import tpu as pltpu

_HIDDEN = (64, 48, 48, 36, 24, 12)
_LN_EPS = 1e-5


def _round_up(x, m):
    return ((x + m - 1) // m) * m


def _mlp_kernel(x_ref, gamma_ref, beta_ref, w0_ref, w_ref, b_ref, o_ref):
    # x_ref: (TB, feat)  gamma/beta: (1, feat)  w0_ref: (feat, P)
    # w_ref: (6, P, P)   b_ref: (7, 1, P)       o_ref: (TB, P)
    x = x_ref[...]
    feat = x.shape[-1]
    inv_f = 1.0 / feat

    # Two-pass LayerNorm (matches the PyTorch reference numerically).
    mu = jnp.sum(x, axis=-1, keepdims=True) * inv_f
    xc = x - mu
    var = jnp.sum(xc * xc, axis=-1, keepdims=True) * inv_f
    h = xc * jax.lax.rsqrt(var + _LN_EPS)
    h = h * gamma_ref[...] + beta_ref[...]

    # Layer 0 at its true K=feat: (TB, feat) @ (feat, P) on the MXU.
    h = jnp.dot(h, w0_ref[...], preferred_element_type=jnp.float32) + b_ref[0]
    h = jnp.tanh(h)

    # Remaining 6 layers: (TB, P) @ (P, P); padded rows/cols are zero so results are exact.
    n_rest = w_ref.shape[0]
    for li in range(n_rest):
        h = jnp.dot(h, w_ref[li], preferred_element_type=jnp.float32) + b_ref[li + 1]
        if li != n_rest - 1:
            h = jnp.tanh(h)

    # Lane-dense full-width store; wrapper slices to output_size.
    o_ref[...] = h.astype(o_ref.dtype)


def init_params(key, input_size, output_size):
    """Deterministic init mirroring PyTorch defaults (LayerNorm: ones/zeros,
    Linear: U(-1/sqrt(fan_in), 1/sqrt(fan_in)))."""
    flat = 1
    for d in input_size:
        flat *= d
    widths = [flat] + list(_HIDDEN) + [output_size]

    params = {
        "gamma": jnp.ones((1, flat), jnp.float32),
        "beta": jnp.zeros((1, flat), jnp.float32),
        "weights": [],
        "biases": [],
    }
    for i in range(len(widths) - 1):
        fan_in, fan_out = widths[i], widths[i + 1]
        key, kw, kb = jax.random.split(key, 3)
        bound = 1.0 / jnp.sqrt(jnp.float32(fan_in))
        w = jax.random.uniform(kw, (fan_in, fan_out), jnp.float32, -bound, bound)
        b = jax.random.uniform(kb, (1, fan_out), jnp.float32, -bound, bound)
        params["weights"].append(w)
        params["biases"].append(b)
    return params


def pack_params(params):
    """Pack layers 1..6 into a zero-padded (6, P, P) slab; keep layer 0 at its true K.
    Done once, outside the hot path."""
    weights, biases = params["weights"], params["biases"]
    n_layers = len(weights)                                 # 7
    feat = weights[0].shape[0]
    p = _round_up(max(w.shape[1] for w in weights), 128)    # lane-dense packed width (>= all N)

    w0 = jnp.zeros((feat, p), jnp.float32).at[:, : weights[0].shape[1]].set(weights[0])

    w_slab = jnp.zeros((n_layers - 1, p, p), jnp.float32)
    for i, w in enumerate(weights[1:]):
        w_slab = w_slab.at[i, : w.shape[0], : w.shape[1]].set(w)

    b_slab = jnp.zeros((n_layers, 1, p), jnp.float32)
    for i, b in enumerate(biases):
        b_slab = b_slab.at[i, :, : b.shape[1]].set(b)

    return params["gamma"], params["beta"], w0, w_slab, b_slab


@functools.partial(jax.jit, static_argnames=("output_size",))
def network_value_based_forward(x, gamma, beta, w0, w_slab, b_slab, output_size):
    """x: (B, *input_size) f32 -> (B, output_size) f32."""
    batch = x.shape[0]
    x2d = x.reshape(batch, -1).astype(jnp.float32)   # Flatten; LN(input_size) == LN(flat axis)
    feat = x2d.shape[1]
    n_rest, p, _ = w_slab.shape                      # (6, P, P)
    n_layers = n_rest + 1

    # Batch tile: cap 1024, chosen to minimise padding, multiple of 8.
    cap = 1024
    n_cap_tiles = pl.cdiv(batch, cap)
    tb = _round_up(pl.cdiv(batch, n_cap_tiles), 8)

    # Explicit VMEM budget (keeps the same code fast on v5e/v6e/v7x).
    def _vmem_bytes(tb_):
        return 4 * (2 * tb_ * feat                 # x tiles, double-buffered
                    + 2 * tb_ * p                  # out tiles, double-buffered
                    + feat * p                     # w0 (single-buffered)
                    + n_rest * p * p               # hidden slab (single-buffered)
                    + n_layers * p                 # biases
                    + 2 * feat)                    # gamma/beta
    budget = 30 << 20                              # well under v7x's 64 MiB physical VMEM
    while tb > 8 and _vmem_bytes(tb) > budget:
        tb = _round_up(tb // 2, 8)

    n_tiles = pl.cdiv(batch, tb)
    b_pad = n_tiles * tb
    if b_pad != batch:
        x2d = jnp.pad(x2d, ((0, b_pad - batch), (0, 0)))
    grid = (n_tiles,)

    vmem_need = _vmem_bytes(tb)
    vmem_limit = None
    if vmem_need + (4 << 20) > (16 << 20):         # only override the scoped default if needed
        vmem_limit = min(vmem_need + (8 << 20), 48 << 20)

    # Cost estimate for what the kernel actually executes (128-padded hidden matmuls).
    cost = pl.CostEstimate(
        flops=2 * b_pad * feat * p + 2 * b_pad * n_rest * p * p + 8 * b_pad * feat,
        transcendentals=b_pad * (n_layers - 1) * p,
        bytes_accessed=4 * (b_pad * feat + b_pad * p
                            + feat * p + n_rest * p * p + n_layers * p + 2 * feat),
    )

    one_buf = pl.Buffered(1)   # constants: no double-buffering
    out = pl.pallas_call(
        _mlp_kernel,
        out_shape=jax.ShapeDtypeStruct((b_pad, p), jnp.float32),
        grid_spec=pltpu.PrefetchScalarGridSpec(
            num_scalar_prefetch=0,
            grid=grid,
            in_specs=[
                pl.BlockSpec((tb, feat), lambda i: (i, 0)),                        # x tile (pipelined)
                pl.BlockSpec((1, feat), lambda i: (0, 0), pipeline_mode=one_buf),  # gamma (resident)
                pl.BlockSpec((1, feat), lambda i: (0, 0), pipeline_mode=one_buf),  # beta  (resident)
                pl.BlockSpec((feat, p), lambda i: (0, 0), pipeline_mode=one_buf),  # w0    (resident)
                pl.BlockSpec((n_rest, p, p), lambda i: (0, 0, 0), pipeline_mode=one_buf),   # hidden slab
                pl.BlockSpec((n_layers, 1, p), lambda i: (0, 0, 0), pipeline_mode=one_buf),  # biases
            ],
            out_specs=pl.BlockSpec((tb, p), lambda i: (i, 0)),                     # lane-dense output
        ),
        compiler_params=pltpu.CompilerParams(
            dimension_semantics=("parallel",),       # megacore sharding on v7x; harmless elsewhere
            vmem_limit_bytes=vmem_limit,
        ),
        cost_estimate=cost,
    )(x2d, gamma, beta, w0, w_slab, b_slab)

    return out[:batch, :output_size]


def _reference_forward(x, params):
    batch = x.shape[0]
    h = x.reshape(batch, -1).astype(jnp.float32)
    mu = jnp.mean(h, axis=-1, keepdims=True)
    var = jnp.mean((h - mu) ** 2, axis=-1, keepdims=True)
    h = (h - mu) / jnp.sqrt(var + _LN_EPS)
    h = h * params["gamma"] + params["beta"]
    n = len(params["weights"])
    for i, (w, b) in enumerate(zip(params["weights"], params["biases"])):
        h = h @ w + b
        if i != n - 1:
            h = jnp.tanh(h)
    return h


if __name__ == "__main__":
    # Small shapes consistent with the module: input_size=(4, 16) -> flattened 64.
    input_size = (4, 16)
    output_size = 8
    batch = 8

    key = jax.random.PRNGKey(0)
    key, kx = jax.random.split(key)
    x = jax.random.normal(kx, (batch,) + input_size, jnp.float32)

    params = init_params(key, input_size, output_size)
    gamma, beta, w0, w_slab, b_slab = pack_params(params)

    y = network_value_based_forward(x, gamma, beta, w0, w_slab, b_slab, output_size)
    y = jax.block_until_ready(y)

    y_ref = _reference_forward(x, params)
    assert y.shape == (batch, output_size)
    assert jnp.allclose(y, y_ref, atol=1e-4, rtol=1e-4), "mismatch vs JAX reference"

    print("KERNEL_OK")
</pallas_src>

<mosaic_0001>
module attributes {stable_mosaic.version = 11 : i64} {
  func.func @_mlp_kernel(%arg0: i32, %arg1: memref<8x64xf32, #tpu.memory_space<vmem>>, %arg2: memref<1x64xf32, #tpu.memory_space<vmem>>, %arg3: memref<1x64xf32, #tpu.memory_space<vmem>>, %arg4: memref<64x128xf32, #tpu.memory_space<vmem>>, %arg5: memref<6x128x128xf32, #tpu.memory_space<vmem>>, %arg6: memref<7x1x128xf32, #tpu.memory_space<vmem>>, %arg7: memref<8x128xf32, #tpu.memory_space<vmem>>) attributes {dimension_semantics = [#tpu.dimension_semantics<parallel>], iteration_bounds = array<i64: 1>, scalar_prefetch = 0 : i64, scratch_operands = 0 : i64, tpu.core_type = #tpu.core_type<tc>, window_params = [{transform_indices = @transform_0, window_bounds = array<i64: 8, 64>}, {pipeline_mode = #tpu.pipeline_mode<synchronous>, transform_indices = @transform_1, window_bounds = array<i64: 1, 64>}, {pipeline_mode = #tpu.pipeline_mode<synchronous>, transform_indices = @transform_2, window_bounds = array<i64: 1, 64>}, {pipeline_mode = #tpu.pipeline_mode<synchronous>, transform_indices = @transform_3, window_bounds = array<i64: 64, 128>}, {pipeline_mode = #tpu.pipeline_mode<synchronous>, transform_indices = @transform_4, window_bounds = array<i64: 6, 128, 128>}, {pipeline_mode = #tpu.pipeline_mode<synchronous>, transform_indices = @transform_5, window_bounds = array<i64: 7, 1, 128>}, {transform_indices = @transform_6, window_bounds = array<i64: 8, 128>}]} {
    %c0 = arith.constant 0 : index
    %c0_0 = arith.constant 0 : index
    %0 = vector.load %arg1[%c0, %c0_0] : memref<8x64xf32, #tpu.memory_space<vmem>>, vector<8x64xf32>
    %cst = arith.constant dense<0.000000e+00> : vector<8xf32>
    %1 = vector.multi_reduction <add>, %0, %cst [1] : vector<8x64xf32> to vector<8xf32>
    %2 = vector.shape_cast %1 : vector<8xf32> to vector<8x1xf32>
    %cst_1 = arith.constant 1.562500e-02 : f32
    %3 = vector.broadcast %cst_1 : f32 to vector<8x1xf32>
    %4 = arith.mulf %2, %3 : vector<8x1xf32>
    %5 = vector.broadcast %4 : vector<8x1xf32> to vector<8x64xf32>
    %6 = arith.subf %0, %5 : vector<8x64xf32>
    %7 = arith.mulf %6, %6 : vector<8x64xf32>
    %cst_2 = arith.constant dense<0.000000e+00> : vector<8xf32>
    %8 = vector.multi_reduction <add>, %7, %cst_2 [1] : vector<8x64xf32> to vector<8xf32>
    %9 = vector.shape_cast %8 : vector<8xf32> to vector<8x1xf32>
    %cst_3 = arith.constant 1.562500e-02 : f32
    %10 = vector.broadcast %cst_3 : f32 to vector<8x1xf32>
    %11 = arith.mulf %9, %10 : vector<8x1xf32>
    %cst_4 = arith.constant 9.99999974E-6 : f32
    %12 = vector.broadcast %cst_4 : f32 to vector<8x1xf32>
    %13 = arith.addf %11, %12 : vector<8x1xf32>
    %14 = math.rsqrt %13 : vector<8x1xf32>
    %15 = vector.broadcast %14 : vector<8x1xf32> to vector<8x64xf32>
    %16 = arith.mulf %6, %15 : vector<8x64xf32>
    %c0_5 = arith.constant 0 : index
    %c0_6 = arith.constant 0 : index
    %17 = vector.load %arg2[%c0_5, %c0_6] : memref<1x64xf32, #tpu.memory_space<vmem>>, vector<1x64xf32>
    %18 = vector.broadcast %17 : vector<1x64xf32> to vector<8x64xf32>
    %19 = arith.mulf %16, %18 : vector<8x64xf32>
    %c0_7 = arith.constant 0 : index
    %c0_8 = arith.constant 0 : index
    %20 = vector.load %arg3[%c0_7, %c0_8] : memref<1x64xf32, #tpu.memory_space<vmem>>, vector<1x64xf32>
    %21 = vector.broadcast %20 : vector<1x64xf32> to vector<8x64xf32>
    %22 = arith.addf %19, %21 : vector<8x64xf32>
    %c0_9 = arith.constant 0 : index
    %c0_10 = arith.constant 0 : index
    %23 = vector.load %arg4[%c0_9, %c0_10] : memref<64x128xf32, #tpu.memory_space<vmem>>, vector<64x128xf32>
    %cst_11 = arith.constant dense<0.000000e+00> : vector<8x128xf32>
    %24 = tpu.matmul %22, %23, %cst_11 {dimension_numbers = #tpu.dot_dimension_numbers<[1], [0], [0], [1], [0, 0, 1, 1], [], []>} : vector<8x64xf32>, vector<64x128xf32>, vector<8x128xf32> -> vector<8x128xf32>
    %c0_12 = arith.constant 0 : index
    %c0_13 = arith.constant 0 : index
    %c0_14 = arith.constant 0 : index
    %25 = vector.load %arg6[%c0_12, %c0_13, %c0_14] : memref<7x1x128xf32, #tpu.memory_space<vmem>>, vector<1x1x128xf32>
    %26 = vector.shape_cast %25 : vector<1x1x128xf32> to vector<1x128xf32>
    %27 = vector.broadcast %26 : vector<1x128xf32> to vector<8x128xf32>
    %28 = arith.addf %24, %27 : vector<8x128xf32>
    %29 = math.tanh %28 : vector<8x128xf32>
    %c0_15 = arith.constant 0 : index
    %c0_16 = arith.constant 0 : index
    %c0_17 = arith.constant 0 : index
    %30 = vector.load %arg5[%c0_15, %c0_16, %c0_17] : memref<6x128x128xf32, #tpu.memory_space<vmem>>, vector<1x128x128xf32>
    %31 = vector.shape_cast %30 : vector<1x128x128xf32> to vector<128x128xf32>
    %cst_18 = arith.constant dense<0.000000e+00> : vector<8x128xf32>
    %32 = tpu.matmul %29, %31, %cst_18 {dimension_numbers = #tpu.dot_dimension_numbers<[1], [0], [0], [1], [0, 0, 1, 1], [], []>} : vector<8x128xf32>, vector<128x128xf32>, vector<8x128xf32> -> vector<8x128xf32>
    %c1 = arith.constant 1 : index
    %c0_19 = arith.constant 0 : index
    %c0_20 = arith.constant 0 : index
    %33 = vector.load %arg6[%c1, %c0_19, %c0_20] : memref<7x1x128xf32, #tpu.memory_space<vmem>>, vector<1x1x128xf32>
    %34 = vector.shape_cast %33 : vector<1x1x128xf32> to vector<1x128xf32>
    %35 = vector.broadcast %34 : vector<1x128xf32> to vector<8x128xf32>
    %36 = arith.addf %32, %35 : vector<8x128xf32>
    %37 = math.tanh %36 : vector<8x128xf32>
    %c1_21 = arith.constant 1 : index
    %c0_22 = arith.constant 0 : index
    %c0_23 = arith.constant 0 : index
    %38 = vector.load %arg5[%c1_21, %c0_22, %c0_23] : memref<6x128x128xf32, #tpu.memory_space<vmem>>, vector<1x128x128xf32>
    %39 = vector.shape_cast %38 : vector<1x128x128xf32> to vector<128x128xf32>
    %cst_24 = arith.constant dense<0.000000e+00> : vector<8x128xf32>
    %40 = tpu.matmul %37, %39, %cst_24 {dimension_numbers = #tpu.dot_dimension_numbers<[1], [0], [0], [1], [0, 0, 1, 1], [], []>} : vector<8x128xf32>, vector<128x128xf32>, vector<8x128xf32> -> vector<8x128xf32>
    %c2 = arith.constant 2 : index
    %c0_25 = arith.constant 0 : index
    %c0_26 = arith.constant 0 : index
    %41 = vector.load %arg6[%c2, %c0_25, %c0_26] : memref<7x1x128xf32, #tpu.memory_space<vmem>>, vector<1x1x128xf32>
    %42 = vector.shape_cast %41 : vector<1x1x128xf32> to vector<1x128xf32>
    %43 = vector.broadcast %42 : vector<1x128xf32> to vector<8x128xf32>
    %44 = arith.addf %40, %43 : vector<8x128xf32>
    %45 = math.tanh %44 : vector<8x128xf32>
    %c2_27 = arith.constant 2 : index
    %c0_28 = arith.constant 0 : index
    %c0_29 = arith.constant 0 : index
    %46 = vector.load %arg5[%c2_27, %c0_28, %c0_29] : memref<6x128x128xf32, #tpu.memory_space<vmem>>, vector<1x128x128xf32>
    %47 = vector.shape_cast %46 : vector<1x128x128xf32> to vector<128x128xf32>
    %cst_30 = arith.constant dense<0.000000e+00> : vector<8x128xf32>
    %48 = tpu.matmul %45, %47, %cst_30 {dimension_numbers = #tpu.dot_dimension_numbers<[1], [0], [0], [1], [0, 0, 1, 1], [], []>} : vector<8x128xf32>, vector<128x128xf32>, vector<8x128xf32> -> vector<8x128xf32>
    %c3 = arith.constant 3 : index
    %c0_31 = arith.constant 0 : index
    %c0_32 = arith.constant 0 : index
    %49 = vector.load %arg6[%c3, %c0_31, %c0_32] : memref<7x1x128xf32, #tpu.memory_space<vmem>>, vector<1x1x128xf32>
    %50 = vector.shape_cast %49 : vector<1x1x128xf32> to vector<1x128xf32>
    %51 = vector.broadcast %50 : vector<1x128xf32> to vector<8x128xf32>
    %52 = arith.addf %48, %51 : vector<8x128xf32>
    %53 = math.tanh %52 : vector<8x128xf32>
    %c3_33 = arith.constant 3 : index
    %c0_34 = arith.constant 0 : index
    %c0_35 = arith.constant 0 : index
    %54 = vector.load %arg5[%c3_33, %c0_34, %c0_35] : memref<6x128x128xf32, #tpu.memory_space<vmem>>, vector<1x128x128xf32>
    %55 = vector.shape_cast %54 : vector<1x128x128xf32> to vector<128x128xf32>
    %cst_36 = arith.constant dense<0.000000e+00> : vector<8x128xf32>
    %56 = tpu.matmul %53, %55, %cst_36 {dimension_numbers = #tpu.dot_dimension_numbers<[1], [0], [0], [1], [0, 0, 1, 1], [], []>} : vector<8x128xf32>, vector<128x128xf32>, vector<8x128xf32> -> vector<8x128xf32>
    %c4 = arith.constant 4 : index
    %c0_37 = arith.constant 0 : index
    %c0_38 = arith.constant 0 : index
    %57 = vector.load %arg6[%c4, %c0_37, %c0_38] : memref<7x1x128xf32, #tpu.memory_space<vmem>>, vector<1x1x128xf32>
    %58 = vector.shape_cast %57 : vector<1x1x128xf32> to vector<1x128xf32>
    %59 = vector.broadcast %58 : vector<1x128xf32> to vector<8x128xf32>
    %60 = arith.addf %56, %59 : vector<8x128xf32>
    %61 = math.tanh %60 : vector<8x128xf32>
    %c4_39 = arith.constant 4 : index
    %c0_40 = arith.constant 0 : index
    %c0_41 = arith.constant 0 : index
    %62 = vector.load %arg5[%c4_39, %c0_40, %c0_41] : memref<6x128x128xf32, #tpu.memory_space<vmem>>, vector<1x128x128xf32>
    %63 = vector.shape_cast %62 : vector<1x128x128xf32> to vector<128x128xf32>
    %cst_42 = arith.constant dense<0.000000e+00> : vector<8x128xf32>
    %64 = tpu.matmul %61, %63, %cst_42 {dimension_numbers = #tpu.dot_dimension_numbers<[1], [0], [0], [1], [0, 0, 1, 1], [], []>} : vector<8x128xf32>, vector<128x128xf32>, vector<8x128xf32> -> vector<8x128xf32>
    %c5 = arith.constant 5 : index
    %c0_43 = arith.constant 0 : index
    %c0_44 = arith.constant 0 : index
    %65 = vector.load %arg6[%c5, %c0_43, %c0_44] : memref<7x1x128xf32, #tpu.memory_space<vmem>>, vector<1x1x128xf32>
    %66 = vector.shape_cast %65 : vector<1x1x128xf32> to vector<1x128xf32>
    %67 = vector.broadcast %66 : vector<1x128xf32> to vector<8x128xf32>
    %68 = arith.addf %64, %67 : vector<8x128xf32>
    %69 = math.tanh %68 : vector<8x128xf32>
    %c5_45 = arith.constant 5 : index
    %c0_46 = arith.constant 0 : index
    %c0_47 = arith.constant 0 : index
    %70 = vector.load %arg5[%c5_45, %c0_46, %c0_47] : memref<6x128x128xf32, #tpu.memory_space<vmem>>, vector<1x128x128xf32>
    %71 = vector.shape_cast %70 : vector<1x128x128xf32> to vector<128x128xf32>
    %cst_48 = arith.constant dense<0.000000e+00> : vector<8x128xf32>
    %72 = tpu.matmul %69, %71, %cst_48 {dimension_numbers = #tpu.dot_dimension_numbers<[1], [0], [0], [1], [0, 0, 1, 1], [], []>} : vector<8x128xf32>, vector<128x128xf32>, vector<8x128xf32> -> vector<8x128xf32>
    %c6 = arith.constant 6 : index
    %c0_49 = arith.constant 0 : index
    %c0_50 = arith.constant 0 : index
    %73 = vector.load %arg6[%c6, %c0_49, %c0_50] : memref<7x1x128xf32, #tpu.memory_space<vmem>>, vector<1x1x128xf32>
    %74 = vector.shape_cast %73 : vector<1x1x128xf32> to vector<1x128xf32>
    %75 = vector.broadcast %74 : vector<1x128xf32> to vector<8x128xf32>
    %76 = arith.addf %72, %75 : vector<8x128xf32>
    %c0_51 = arith.constant 0 : index
    %c0_52 = arith.constant 0 : index
    %77 = vector.load %arg7[%c0_51, %c0_52] : memref<8x128xf32, #tpu.memory_space<vmem>>, vector<8x128xf32>
    tpu.vector_store %arg7[%c0_51, %c0_52], %76 {strides = array<i32>} : memref<8x128xf32, #tpu.memory_space<vmem>>, vector<8x128xf32>,
    return
  }
  func.func @transform_0(%arg0: i32) -> (i32, i32) {
    %c0_i32 = arith.constant 0 : i32
    %c0_i32_0 = arith.constant 0 : i32
    return %arg0, %c0_i32 : i32, i32
  }
  func.func @transform_1(%arg0: i32) -> (i32, i32) {
    %c0_i32 = arith.constant 0 : i32
    %c0_i32_0 = arith.constant 0 : i32
    %c0_i32_1 = arith.constant 0 : i32
    return %c0_i32, %c0_i32_0 : i32, i32
  }
  func.func @transform_2(%arg0: i32) -> (i32, i32) {
    %c0_i32 = arith.constant 0 : i32
    %c0_i32_0 = arith.constant 0 : i32
    %c0_i32_1 = arith.constant 0 : i32
    return %c0_i32, %c0_i32_0 : i32, i32
  }
  func.func @transform_3(%arg0: i32) -> (i32, i32) {
    %c0_i32 = arith.constant 0 : i32
    %c0_i32_0 = arith.constant 0 : i32
    %c0_i32_1 = arith.constant 0 : i32
    return %c0_i32, %c0_i32_0 : i32, i32
  }
  func.func @transform_4(%arg0: i32) -> (i32, i32, i32) {
    %c0_i32 = arith.constant 0 : i32
    %c0_i32_0 = arith.constant 0 : i32
    %c0_i32_1 = arith.constant 0 : i32
    %c0_i32_2 = arith.constant 0 : i32
    return %c0_i32, %c0_i32_0, %c0_i32_1 : i32, i32, i32
  }
  func.func @transform_5(%arg0: i32) -> (i32, i32, i32) {
    %c0_i32 = arith.constant 0 : i32
    %c0_i32_0 = arith.constant 0 : i32
    %c0_i32_1 = arith.constant 0 : i32
    %c0_i32_2 = arith.constant 0 : i32
    return %c0_i32, %c0_i32_0, %c0_i32_1 : i32, i32, i32
  }
  func.func @transform_6(%arg0: i32) -> (i32, i32) {
    %c0_i32 = arith.constant 0 : i32
    %c0_i32_0 = arith.constant 0 : i32
    return %arg0, %c0_i32 : i32, i32
  }
}

</mosaic_0001>

<llo_original>
// kernel: network_value_based_forward.1
$region0: #{network_value_based_forward.1}
  #allocation0 [shape = 'u32[]', space=smem, size = 0x4, offset = 0x4, fixed_abs, tag = 'smem constant byte address 0x4 - core index']
  #allocation1 [shape = 'u32[72,128]{1,0:T(1,128)}', space=vmem, size = 0x9000, scoped, tag = 'internal scratch']
  %s0 = inlined_call_operand.vmem [shape: f32[8,64], index: 0, kind: input, shape index: {}]
  %s1 = inlined_call_operand.vmem [shape: f32[1,64], index: 1, kind: input, shape index: {}]
  %s2 = inlined_call_operand.vmem [shape: f32[1,64], index: 2, kind: input, shape index: {}]
  %s3 = inlined_call_operand.hbm [shape: f32[64,128], index: 3, kind: input, shape index: {}]
  %s4 = inlined_call_operand.hbm [shape: f32[6,128,128], index: 4, kind: input, shape index: {}]
  %s5 = inlined_call_operand.vmem [shape: f32[7,1,128], index: 5, kind: input, shape index: {}]
  %s6 = inlined_call_operand.hbm [shape: f32[8,128], index: 6, kind: output, shape index: {}]
  %s7 = sld [smem:[#allocation0]]
  $region42: #{network_value_based_forward.1} parent=0
    _
  %s9 = ssub.s32 1, %s7
  %s10 = scalar_select 0, %s9, %s7
  $region1: #{network_value_based_forward.1} parent=0
    #allocation2 [shape = 'u8[32768]{0}', space=vmem, size = 0x8000, scoped, tag = 'input window, operand 3, single buffered']
    #allocation3 [shape = 's32[1]{0}', space=sflag, size = 0x4, scoped, tag = 'scoped memory for network_value_based_forward.1']
    #allocation4 [shape = 's32[1]{0}', space=sflag, size = 0x4, scoped, tag = 'scoped memory for network_value_based_forward.1']
    #allocation5 [shape = 'u8[393216]{0}', space=vmem, size = 0x60000, scoped, tag = 'input window, operand 4, single buffered']
    #allocation6 [shape = 's32[1]{0}', space=sflag, size = 0x4, scoped, tag = 'scoped memory for network_value_based_forward.1']
    #allocation7 [shape = 'u8[4096]{0}', space=vmem, size = 0x1000, scoped, tag = 'output window, operand 0, single buffered']
    %11 = vsyncpa [#allocation3], 0
    %12 = vsyncpa [#allocation6], 0
    %13 = vsyncpa [#allocation4], 0
    // Predicated region
    $region2: #{network_value_based_forward.1} parent=1 // pred_check
      _
    $region3: #{network_value_based_forward.1} parent=1 // pred_check_branch
      %15 = sbr.rel (0) target = $region5
    $region4: #{network_value_based_forward.1} parent=1 // pred_region
      _
    $region5: #{network_value_based_forward.1} parent=1 // pred_fallthru
      _
    // Predicated region
    $region6: #{network_value_based_forward.1} parent=1 // pred_check
      _
    $region7: #{network_value_based_forward.1} parent=1 // pred_check_branch
      %17 = sbr.rel (0) target = $region9
    $region8: #{network_value_based_forward.1} parent=1 // pred_region
      _
    $region9: #{network_value_based_forward.1} parent=1 // pred_fallthru
      _
    // Predicated region
    $region10: #{network_value_based_forward.1} parent=1 // pred_check
      _
    $region11: #{network_value_based_forward.1} parent=1 // pred_check_branch
      %19 = sbr.rel (0) target = $region13
    $region12: #{network_value_based_forward.1} parent=1 // pred_region
      _
    $region13: #{network_value_based_forward.1} parent=1 // pred_fallthru
      _
    // Predicated region
    $region14: #{network_value_based_forward.1} parent=1 // pred_check
      _
    $region15: #{network_value_based_forward.1} parent=1 // pred_check_branch
      %21 = sbr.rel (0) target = $region17
    $region16: #{network_value_based_forward.1} parent=1 // pred_region
      %23 = vsyncadd [#allocation3], 0
      %s24 = sshll.u32 %s3, 4
      %s25 = int_to_ptr.hbm [resolvable:$true] %s24
      %s26 = sshll.u32 [#allocation2], 4
      %s27 = int_to_ptr.vmem [resolvable:$true] %s26
      %32 = dma.hbm_to_vmem [thread:$0]  %s25, 1024, %s27, [#allocation3], 128, 128, 8
    $region17: #{network_value_based_forward.1} parent=1 // pred_fallthru
      _
    // Predicated region
    $region18: #{network_value_based_forward.1} parent=1 // pred_check
      _
    $region19: #{network_value_based_forward.1} parent=1 // pred_check_branch
      %34 = sbr.rel (0) target = $region21
    $region20: #{network_value_based_forward.1} parent=1 // pred_region
      %36 = vsyncadd [#allocation6], 0
      %s37 = sshll.u32 %s4, 4
      %s38 = int_to_ptr.hbm [resolvable:$true] %s37
      %s39 = sshll.u32 [#allocation5], 4
      %s40 = int_to_ptr.vmem [resolvable:$true] %s39
      %45 = dma.hbm_to_vmem [thread:$0]  %s38, 12288, %s40, [#allocation6], 128, 128, 8
    $region21: #{network_value_based_forward.1} parent=1 // pred_fallthru
      _
    // Predicated region
    $region22: #{network_value_based_forward.1} parent=1 // pred_check
      _
    $region23: #{network_value_based_forward.1} parent=1 // pred_check_branch
      %47 = sbr.rel (0) target = $region25
    $region24: #{network_value_based_forward.1} parent=1 // pred_region
      _
    $region25: #{network_value_based_forward.1} parent=1 // pred_fallthru
      _
    // Predicated region
    $region26: #{network_value_based_forward.1} parent=1 // pred_check
      _
    $region27: #{network_value_based_forward.1} parent=1 // pred_check_branch
      %49 = sbr.rel (0) target = $region29
    $region28: #{network_value_based_forward.1} parent=1 // pred_region
      %51 = dma.done [#allocation3], 1024
    $region29: #{network_value_based_forward.1} parent=1 // pred_fallthru
      _
    // Predicated region
    $region30: #{network_value_based_forward.1} parent=1 // pred_check
      _
    $region31: #{network_value_based_forward.1} parent=1 // pred_check_branch
      %53 = sbr.rel (0) target = $region33
    $region32: #{network_value_based_forward.1} parent=1 // pred_region
      %55 = dma.done [#allocation6], 12288
    $region33: #{network_value_based_forward.1} parent=1 // pred_fallthru
      _
    %v56 = vld [vmem:[%s0] sm:$0xff]
    %vm57 = vcmask 523264
    %v58 = vsel %vm57, %v56, 0.0
    %59 = vadd.xlane.f32.xlu0 %v58
    %v60 = vpop.xlane.xlu0 %59
    %v61 = vmul.f32 %v60, 0.015625
    %v62 = vsub.f32 %v56, %v61
    %v63 = vmul.f32 %v62, %v62
    %v64 = vsel %vm57, %v63, 0.0
    %65 = vadd.xlane.f32.xlu0 %v64
    %v66 = vpop.xlane.xlu0 %65
    %v67 = vmul.f32 %v66, 0.015625
    %v68 = vadd.f32 %v67, 1e-05
    %v69 = vrsqrt.pop %v68
    %v70 = vmul.f32 %v69, %v68
    %v71 = vmul.f32 %v70, %v69
    %v72 = vmul.f32 0.5, %v71
    %v73 = vsub.f32 1.5, %v72
    %v74 = vmul.f32 %v69, %v73
    %vm75 = vweird.f32 %v68
    %vm76 = vweird.f32 %v69
    %vm77 = vmor %vm75, %vm76
    %v78 = vsel %vm77, %v69, %v74
    %v79 = vmul.f32 %v62, %v78
    %v80 = vld [vmem:[%s1] sm:$0x1]
    %v82 = vperm.slane %v80, 0
    %v84 = vmul.f32 %v79, %v82
    %v85 = vld [vmem:[%s2] sm:$0x1]
    %v87 = vperm.slane %v85, 0
    %v89 = vadd.f32 %v84, %v87
    %v90 = vld [vmem:[#allocation2] sm:$0xff]
    %v91 = vld [vmem:[#allocation2 + $0x8] sm:$0xff]
    %v92 = vld [vmem:[#allocation2 + $0x10] sm:$0xff]
    %v93 = vld [vmem:[#allocation2 + $0x18] sm:$0xff]
    %v94 = vld [vmem:[#allocation2 + $0x20] sm:$0xff]
    %v95 = vld [vmem:[#allocation2 + $0x28] sm:$0xff]
    %v96 = vld [vmem:[#allocation2 + $0x30] sm:$0xff]
    %v97 = vld [vmem:[#allocation2 + $0x38] sm:$0xff]
    %v98 = vld [vmem:[%s5] sm:$0x1]
    %v100 = vperm.slane %v98, 0
    %v103 = vsel %vm57, %v89, 0
    %105 = vmatpush.msra.mxu0 0.0
    %106 = vmatpush.msra.mxu0 0.0
    %107 = vmatpush.msra.mxu0 0.0
    %108 = vmatpush.msra.mxu0 0.0
    %109 = vmatpush.msra.mxu0 0.0
    %110 = vmatpush.msra.mxu0 0.0
    %111 = vmatpush.msra.mxu0 0.0
    %112 = vmatpush.msra.mxu0 0.0
    %113 = vmatpush.msra.mxu0 %v97
    %114 = vmatpush.msra.mxu0 %v96
    %115 = vmatpush.msra.mxu0 %v95
    %116 = vmatpush.msra.mxu0 %v94
    %117 = vmatpush.msra.mxu0 %v93
    %118 = vmatpush.msra.mxu0 %v92
    %119 = vmatpush.msra.mxu0 %v91
    %120 = vmatpush.msra.mxu0 %v90
    %121 = vmatmul.f32.gmra.mxu0 %v103
    %v122 = vpop.f32.mrf.mxu0
    %v123 = vadd.f32 %v100, %v122
    %124 = vdwg.mxu0
    %v125 = vtanh.pop %v123
    %v126 = vld [vmem:[#allocation5] sm:$0xff]
    %v127 = vld [vmem:[#allocation5 + $0x8] sm:$0xff]
    %v128 = vld [vmem:[#allocation5 + $0x10] sm:$0xff]
    %v129 = vld [vmem:[#allocation5 + $0x18] sm:$0xff]
    %v130 = vld [vmem:[#allocation5 + $0x20] sm:$0xff]
    %v131 = vld [vmem:[#allocation5 + $0x28] sm:$0xff]
    %v132 = vld [vmem:[#allocation5 + $0x30] sm:$0xff]
    %v133 = vld [vmem:[#allocation5 + $0x38] sm:$0xff]
    %v134 = vld [vmem:[#allocation5 + $0x40] sm:$0xff]
    %v135 = vld [vmem:[#allocation5 + $0x48] sm:$0xff]
    %v136 = vld [vmem:[#allocation5 + $0x50] sm:$0xff]
    %v137 = vld [vmem:[#allocation5 + $0x58] sm:$0xff]
    %v138 = vld [vmem:[#allocation5 + $0x60] sm:$0xff]
    %v139 = vld [vmem:[#allocation5 + $0x68] sm:$0xff]
    %v140 = vld [vmem:[#allocation5 + $0x70] sm:$0xff]
    %v141 = vld [vmem:[#allocation5 + $0x78] sm:$0xff]
    %s142 = scalar_lea.vmem %s5, 1
    %v143 = vld [vmem:[%s142] sm:$0x1]
    %v145 = vperm.slane %v143, 0
    %147 = vmatpush.msra.mxu0 %v141
    %148 = vmatpush.msra.mxu0 %v140
    %149 = vmatpush.msra.mxu0 %v139
    %150 = vmatpush.msra.mxu0 %v138
    %151 = vmatpush.msra.mxu0 %v137
    %152 = vmatpush.msra.mxu0 %v136
    %153 = vmatpush.msra.mxu0 %v135
    %154 = vmatpush.msra.mxu0 %v134
    %155 = vmatpush.msra.mxu0 %v133
    %156 = vmatpush.msra.mxu0 %v132
    %157 = vmatpush.msra.mxu0 %v131
    %158 = vmatpush.msra.mxu0 %v130
    %159 = vmatpush.msra.mxu0 %v129
    %160 = vmatpush.msra.mxu0 %v128
    %161 = vmatpush.msra.mxu0 %v127
    %162 = vmatpush.msra.mxu0 %v126
    %163 = vmatmul.f32.gmra.mxu0 %v125
    %v164 = vpop.f32.mrf.mxu0
    %v165 = vadd.f32 %v145, %v164
    %166 = vdwg.mxu0
    %v167 = vtanh.pop %v165
    %s168 = scalar_lea.vmem [#allocation5], 128
    %v169 = vld [vmem:[%s168] sm:$0xff]
    %v170 = vld [vmem:[%s168 + $0x8] sm:$0xff]
    %v171 = vld [vmem:[%s168 + $0x10] sm:$0xff]
    %v172 = vld [vmem:[%s168 + $0x18] sm:$0xff]
    %v173 = vld [vmem:[%s168 + $0x20] sm:$0xff]
    %v174 = vld [vmem:[%s168 + $0x28] sm:$0xff]
    %v175 = vld [vmem:[%s168 + $0x30] sm:$0xff]
    %v176 = vld [vmem:[%s168 + $0x38] sm:$0xff]
    %v177 = vld [vmem:[%s168 + $0x40] sm:$0xff]
    %v178 = vld [vmem:[%s168 + $0x48] sm:$0xff]
    %v179 = vld [vmem:[%s168 + $0x50] sm:$0xff]
    %v180 = vld [vmem:[%s168 + $0x58] sm:$0xff]
    %v181 = vld [vmem:[%s168 + $0x60] sm:$0xff]
    %v182 = vld [vmem:[%s168 + $0x68] sm:$0xff]
    %v183 = vld [vmem:[%s168 + $0x70] sm:$0xff]
    %v184 = vld [vmem:[%s168 + $0x78] sm:$0xff]
    %s185 = scalar_lea.vmem %s5, 2
    %v186 = vld [vmem:[%s185] sm:$0x1]
    %v188 = vperm.slane %v186, 0
    %190 = vmatpush.msra.mxu0 %v184
    %191 = vmatpush.msra.mxu0 %v183
    %192 = vmatpush.msra.mxu0 %v182
    %193 = vmatpush.msra.mxu0 %v181
    %194 = vmatpush.msra.mxu0 %v180
    %195 = vmatpush.msra.mxu0 %v179
    %196 = vmatpush.msra.mxu0 %v178
    %197 = vmatpush.msra.mxu0 %v177
    %198 = vmatpush.msra.mxu0 %v176
    %199 = vmatpush.msra.mxu0 %v175
    %200 = vmatpush.msra.mxu0 %v174
    %201 = vmatpush.msra.mxu0 %v173
    %202 = vmatpush.msra.mxu0 %v172
    %203 = vmatpush.msra.mxu0 %v171
    %204 = vmatpush.msra.mxu0 %v170
    %205 = vmatpush.msra.mxu0 %v169
    %206 = vmatmul.f32.gmra.mxu0 %v167
    %v207 = vpop.f32.mrf.mxu0
    %v208 = vadd.f32 %v188, %v207
    %209 = vdwg.mxu0
    %v210 = vtanh.pop %v208
    %s211 = scalar_lea.vmem [#allocation5], 256
    %v212 = vld [vmem:[%s211] sm:$0xff]
    %v213 = vld [vmem:[%s211 + $0x8] sm:$0xff]
    %v214 = vld [vmem:[%s211 + $0x10] sm:$0xff]
    %v215 = vld [vmem:[%s211 + $0x18] sm:$0xff]
    %v216 = vld [vmem:[%s211 + $0x20] sm:$0xff]
    %v217 = vld [vmem:[%s211 + $0x28] sm:$0xff]
    %v218 = vld [vmem:[%s211 + $0x30] sm:$0xff]
    %v219 = vld [vmem:[%s211 + $0x38] sm:$0xff]
    %v220 = vld [vmem:[%s211 + $0x40] sm:$0xff]
    %v221 = vld [vmem:[%s211 + $0x48] sm:$0xff]
    %v222 = vld [vmem:[%s211 + $0x50] sm:$0xff]
    %v223 = vld [vmem:[%s211 + $0x58] sm:$0xff]
    %v224 = vld [vmem:[%s211 + $0x60] sm:$0xff]
    %v225 = vld [vmem:[%s211 + $0x68] sm:$0xff]
    %v226 = vld [vmem:[%s211 + $0x70] sm:$0xff]
    %v227 = vld [vmem:[%s211 + $0x78] sm:$0xff]
    %s228 = scalar_lea.vmem %s5, 3
    %v229 = vld [vmem:[%s228] sm:$0x1]
    %v231 = vperm.slane %v229, 0
    %233 = vmatpush.msra.mxu0 %v227
    %234 = vmatpush.msra.mxu0 %v226
    %235 = vmatpush.msra.mxu0 %v225
    %236 = vmatpush.msra.mxu0 %v224
    %237 = vmatpush.msra.mxu0 %v223
    %238 = vmatpush.msra.mxu0 %v222
    %239 = vmatpush.msra.mxu0 %v221
    %240 = vmatpush.msra.mxu0 %v220
    %241 = vmatpush.msra.mxu0 %v219
    %242 = vmatpush.msra.mxu0 %v218
    %243 = vmatpush.msra.mxu0 %v217
    %244 = vmatpush.msra.mxu0 %v216
    %245 = vmatpush.msra.mxu0 %v215
    %246 = vmatpush.msra.mxu0 %v214
    %247 = vmatpush.msra.mxu0 %v213
    %248 = vmatpush.msra.mxu0 %v212
    %249 = vmatmul.f32.gmra.mxu0 %v210
    %v250 = vpop.f32.mrf.mxu0
    %v251 = vadd.f32 %v231, %v250
    %252 = vdwg.mxu0
    %v253 = vtanh.pop %v251
    %s254 = scalar_lea.vmem [#allocation5], 384
    %v255 = vld [vmem:[%s254] sm:$0xff]
    %v256 = vld [vmem:[%s254 + $0x8] sm:$0xff]
    %v257 = vld [vmem:[%s254 + $0x10] sm:$0xff]
    %v258 = vld [vmem:[%s254 + $0x18] sm:$0xff]
    %v259 = vld [vmem:[%s254 + $0x20] sm:$0xff]
    %v260 = vld [vmem:[%s254 + $0x28] sm:$0xff]
    %v261 = vld [vmem:[%s254 + $0x30] sm:$0xff]
    %v262 = vld [vmem:[%s254 + $0x38] sm:$0xff]
    %v263 = vld [vmem:[%s254 + $0x40] sm:$0xff]
    %v264 = vld [vmem:[%s254 + $0x48] sm:$0xff]
    %v265 = vld [vmem:[%s254 + $0x50] sm:$0xff]
    %v266 = vld [vmem:[%s254 + $0x58] sm:$0xff]
    %v267 = vld [vmem:[%s254 + $0x60] sm:$0xff]
    %v268 = vld [vmem:[%s254 + $0x68] sm:$0xff]
    %v269 = vld [vmem:[%s254 + $0x70] sm:$0xff]
    %v270 = vld [vmem:[%s254 + $0x78] sm:$0xff]
    %s271 = scalar_lea.vmem %s5, 4
    %v272 = vld [vmem:[%s271] sm:$0x1]
    %v274 = vperm.slane %v272, 0
    %276 = vmatpush.msra.mxu0 %v270
    %277 = vmatpush.msra.mxu0 %v269
    %278 = vmatpush.msra.mxu0 %v268
    %279 = vmatpush.msra.mxu0 %v267
    %280 = vmatpush.msra.mxu0 %v266
    %281 = vmatpush.msra.mxu0 %v265
    %282 = vmatpush.msra.mxu0 %v264
    %283 = vmatpush.msra.mxu0 %v263
    %284 = vmatpush.msra.mxu0 %v262
    %285 = vmatpush.msra.mxu0 %v261
    %286 = vmatpush.msra.mxu0 %v260
    %287 = vmatpush.msra.mxu0 %v259
    %288 = vmatpush.msra.mxu0 %v258
    %289 = vmatpush.msra.mxu0 %v257
    %290 = vmatpush.msra.mxu0 %v256
    %291 = vmatpush.msra.mxu0 %v255
    %292 = vmatmul.f32.gmra.mxu0 %v253
    %v293 = vpop.f32.mrf.mxu0
    %v294 = vadd.f32 %v274, %v293
    %295 = vdwg.mxu0
    %v296 = vtanh.pop %v294
    %s297 = scalar_lea.vmem [#allocation5], 512
    %v298 = vld [vmem:[%s297] sm:$0xff]
    %v299 = vld [vmem:[%s297 + $0x8] sm:$0xff]
    %v300 = vld [vmem:[%s297 + $0x10] sm:$0xff]
    %v301 = vld [vmem:[%s297 + $0x18] sm:$0xff]
    %v302 = vld [vmem:[%s297 + $0x20] sm:$0xff]
    %v303 = vld [vmem:[%s297 + $0x28] sm:$0xff]
    %v304 = vld [vmem:[%s297 + $0x30] sm:$0xff]
    %v305 = vld [vmem:[%s297 + $0x38] sm:$0xff]
    %v306 = vld [vmem:[%s297 + $0x40] sm:$0xff]
    %v307 = vld [vmem:[%s297 + $0x48] sm:$0xff]
    %v308 = vld [vmem:[%s297 + $0x50] sm:$0xff]
    %v309 = vld [vmem:[%s297 + $0x58] sm:$0xff]
    %v310 = vld [vmem:[%s297 + $0x60] sm:$0xff]
    %v311 = vld [vmem:[%s297 + $0x68] sm:$0xff]
    %v312 = vld [vmem:[%s297 + $0x70] sm:$0xff]
    %v313 = vld [vmem:[%s297 + $0x78] sm:$0xff]
    %s314 = scalar_lea.vmem %s5, 5
    %v315 = vld [vmem:[%s314] sm:$0x1]
    %v317 = vperm.slane %v315, 0
    %319 = vmatpush.msra.mxu0 %v313
    %320 = vmatpush.msra.mxu0 %v312
    %321 = vmatpush.msra.mxu0 %v311
    %322 = vmatpush.msra.mxu0 %v310
    %323 = vmatpush.msra.mxu0 %v309
    %324 = vmatpush.msra.mxu0 %v308
    %325 = vmatpush.msra.mxu0 %v307
    %326 = vmatpush.msra.mxu0 %v306
    %327 = vmatpush.msra.mxu0 %v305
    %328 = vmatpush.msra.mxu0 %v304
    %329 = vmatpush.msra.mxu0 %v303
    %330 = vmatpush.msra.mxu0 %v302
    %331 = vmatpush.msra.mxu0 %v301
    %332 = vmatpush.msra.mxu0 %v300
    %333 = vmatpush.msra.mxu0 %v299
    %334 = vmatpush.msra.mxu0 %v298
    %335 = vmatmul.f32.gmra.mxu0 %v296
    %v336 = vpop.f32.mrf.mxu0
    %v337 = vadd.f32 %v317, %v336
    %338 = vdwg.mxu0
    %v339 = vtanh.pop %v337
    %s340 = scalar_lea.vmem [#allocation5], 640
    %v341 = vld [vmem:[%s340] sm:$0xff]
    %v342 = vld [vmem:[%s340 + $0x8] sm:$0xff]
    %v343 = vld [vmem:[%s340 + $0x10] sm:$0xff]
    %v344 = vld [vmem:[%s340 + $0x18] sm:$0xff]
    %v345 = vld [vmem:[%s340 + $0x20] sm:$0xff]
    %v346 = vld [vmem:[%s340 + $0x28] sm:$0xff]
    %v347 = vld [vmem:[%s340 + $0x30] sm:$0xff]
    %v348 = vld [vmem:[%s340 + $0x38] sm:$0xff]
    %v349 = vld [vmem:[%s340 + $0x40] sm:$0xff]
    %v350 = vld [vmem:[%s340 + $0x48] sm:$0xff]
    %v351 = vld [vmem:[%s340 + $0x50] sm:$0xff]
    %v352 = vld [vmem:[%s340 + $0x58] sm:$0xff]
    %v353 = vld [vmem:[%s340 + $0x60] sm:$0xff]
    %v354 = vld [vmem:[%s340 + $0x68] sm:$0xff]
    %v355 = vld [vmem:[%s340 + $0x70] sm:$0xff]
    %v356 = vld [vmem:[%s340 + $0x78] sm:$0xff]
    %s357 = scalar_lea.vmem %s5, 6
    %v358 = vld [vmem:[%s357] sm:$0x1]
    %v360 = vperm.slane %v358, 0
    %362 = vmatpush.msra.mxu0 %v356
    %363 = vmatpush.msra.mxu0 %v355
    %364 = vmatpush.msra.mxu0 %v354
    %365 = vmatpush.msra.mxu0 %v353
    %366 = vmatpush.msra.mxu0 %v352
    %367 = vmatpush.msra.mxu0 %v351
    %368 = vmatpush.msra.mxu0 %v350
    %369 = vmatpush.msra.mxu0 %v349
    %370 = vmatpush.msra.mxu0 %v348
    %371 = vmatpush.msra.mxu0 %v347
    %372 = vmatpush.msra.mxu0 %v346
    %373 = vmatpush.msra.mxu0 %v345
    %374 = vmatpush.msra.mxu0 %v344
    %375 = vmatpush.msra.mxu0 %v343
    %376 = vmatpush.msra.mxu0 %v342
    %377 = vmatpush.msra.mxu0 %v341
    %378 = vmatmul.f32.gmra.mxu0 %v339
    %v379 = vpop.f32.mrf.mxu0
    %v380 = vadd.f32 %v360, %v379
    %381 = vdwg.mxu0
    %382 = vst [vmem:[#allocation7] sm:$0xff] %v380
    // Predicated region
    $region34: #{network_value_based_forward.1} parent=1 // pred_check
      _
    $region35: #{network_value_based_forward.1} parent=1 // pred_check_branch
      %384 = sbr.rel (0) target = $region37
    $region36: #{network_value_based_forward.1} parent=1 // pred_region
      %386 = vsyncadd [#allocation4], 0
      %s388 = sshll.u32 [#allocation7], 4
      %s389 = int_to_ptr.vmem [resolvable:$true] %s388
      %s390 = sshll.u32 %s6, 4
      %s391 = int_to_ptr.hbm [resolvable:$true] %s390
      %393 = dma.vmem_to_hbm [thread:$0]  %s389, 128, %s391, [#allocation4]
    $region37: #{network_value_based_forward.1} parent=1 // pred_fallthru
      _
    // Predicated region
    $region38: #{network_value_based_forward.1} parent=1 // pred_check
      _
    $region39: #{network_value_based_forward.1} parent=1 // pred_check_branch
      %395 = sbr.rel (0) target = $region41
    $region40: #{network_value_based_forward.1} parent=1 // pred_region
      %397 = dma.done [#allocation4], 128
    $region41: #{network_value_based_forward.1} parent=1 // pred_fallthru
      _
    %398 = vsyncpa [#allocation3], 1
    %399 = vsyncpa [#allocation6], 1
    %400 = vsyncpa [#allocation4], 1

</llo_original>
